<compile_context>
chip_gen: v6e
topology: v6e:2x2x1
jax: 0.10.0
libtpu: 0.0.40
codegen_flags: <defaults>
</compile_context>

<pallas_src>
import functools

import jax
import jax.numpy as jnp
from jax.experimental import pallas as pl
from jax.experimental.pallas import tpu as pltpu


def _round_up(x: int, m: int) -> int:
    return (x + m - 1) // m * m


@functools.lru_cache(maxsize=None)
def _device_params():
    """Returns (per-buffer tile bytes, min elements for the Pallas path)."""
    try:
        kind = jax.devices()[0].device_kind.lower()
    except Exception:  # pragma: no cover - defensive
        kind = ""
    if "v7" in kind:
        # Faster HBM -> launch overhead is a bigger fraction; bias to fallback.
        return 4 << 20, 2 << 20          # 4 MiB/buffer, 2M-element threshold
    if "v6" in kind:
        return 4 << 20, 1 << 19          # 4 MiB/buffer, 512K-element threshold
    # v5e (16 MiB scoped-VMEM default) and unknown chips: stay conservative.
    return 2 << 20, 1 << 18              # 2 MiB/buffer, 256K-element threshold


@functools.lru_cache(maxsize=None)
def _build_rectified_call(rows, width, block_rows, grid_len, dtype_name, am, sm):
    dtype = jnp.dtype(dtype_name)
    itemsize = dtype.itemsize
    total = rows * width
    block_bytes = block_rows * width * itemsize
    # 1 input + 2 outputs, double-buffered, plus headroom. Cap well under the
    # v7x 64 MiB physical VMEM.
    vmem_limit = min(6 * block_bytes + (4 << 20), 48 << 20)

    one_minus_am = 1.0 - am
    one_minus_sm = 1.0 - sm

    def kernel(t_ref, alpha_ref, sigma_ref):
        t = t_ref[...].astype(jnp.float32)
        # alpha_t = 1 - t * (1 - alpha_min);  sigma_t = sigma_min + t * (1 - sigma_min)
        alpha_ref[...] = (1.0 - t * one_minus_am).astype(alpha_ref.dtype)
        sigma_ref[...] = (sm + t * one_minus_sm).astype(sigma_ref.dtype)

    spec = pl.BlockSpec((block_rows, width), lambda i: (i, 0))

    return pl.pallas_call(
        kernel,
        out_shape=(
            jax.ShapeDtypeStruct((rows, width), dtype),
            jax.ShapeDtypeStruct((rows, width), dtype),
        ),
        grid=(grid_len,),
        in_specs=[spec],
        out_specs=(spec, spec),
        compiler_params=pltpu.CompilerParams(
            dimension_semantics=("parallel",),
            vmem_limit_bytes=vmem_limit,
        ),
        cost_estimate=pl.CostEstimate(
            flops=4 * total,
            transcendentals=0,
            bytes_accessed=3 * total * itemsize,
        ),
    )


def _xla_fallback(t, alpha_min, sigma_min):
    one_minus_t = 1.0 - t
    return t * alpha_min + one_minus_t, t + one_minus_t * sigma_min


def rectified_schedule(t, alpha_min=0.001, sigma_min=0.001, *, force_pallas=False):
    """Pallas TPU implementation of RectifiedSchedule.forward.

    Returns (alpha_t, sigma_t) with the same shape/dtype as t.
    """
    orig_shape = t.shape
    dtype = jnp.dtype(t.dtype)
    n = int(t.size)

    # Traced / array-valued schedule parameters: just use the fused XLA path.
    try:
        am = float(alpha_min)
        sm = float(sigma_min)
    except (TypeError, jax.errors.ConcretizationTypeError):
        return _xla_fallback(t, alpha_min, sigma_min)

    tile_bytes, min_elems = _device_params()

    # Widest lane-dense layout that divides n exactly (no pad/slice copies).
    width = 0
    for w in (1024, 512, 256, 128):
        if n % w == 0:
            width = w
            break

    if n == 0 or width == 0 or not (force_pallas or n >= min_elems):
        # Tiny or ragged inputs: XLA's fused elementwise kernel already hits
        # the HBM roofline; Pallas launch / layout plumbing can only lose here.
        return _xla_fallback(t, am, sm)

    rows = n // width
    t2d = t.reshape(rows, width)

    itemsize = dtype.itemsize
    tile_rows = max(8, (tile_bytes // (width * itemsize)) // 8 * 8)
    if rows >= 16:
        # At least 2 grid steps so "parallel" can shard across both v7x
        # TensorCores; negligible (~0.35 us) extra step cost on 1-TC chips.
        block_rows = min(tile_rows, _round_up(pl.cdiv(rows, 2), 8))
    else:
        block_rows = rows  # full-extent block (always layout-legal)
    grid_len = pl.cdiv(rows, block_rows)

    call = _build_rectified_call(rows, width, block_rows, grid_len,
                                 dtype.name, am, sm)
    alpha2d, sigma2d = call(t2d)
    return alpha2d.reshape(orig_shape), sigma2d.reshape(orig_shape)


def _reference(t, alpha_min, sigma_min):
    one_minus_t = 1.0 - t
    return t * alpha_min + one_minus_t, t + one_minus_t * sigma_min


if __name__ == "__main__":
    key = jax.random.PRNGKey(0)
    k0, k1, k2, k3 = jax.random.split(key, 4)
    alpha_min, sigma_min = 0.001, 0.001

    # --- f32, image-shaped times (2, 4, 16, 16); single lane-dense block. ---
    t = jax.random.uniform(k0, (2, 4, 16, 16), dtype=jnp.float32)
    alpha, sigma = rectified_schedule(t, alpha_min, sigma_min, force_pallas=True)
    jax.block_until_ready((alpha, sigma))
    alpha_ref, sigma_ref = _reference(t, alpha_min, sigma_min)
    assert alpha.shape == t.shape and sigma.shape == t.shape
    assert alpha.dtype == t.dtype and sigma.dtype == t.dtype
    assert jnp.allclose(alpha, alpha_ref, atol=1e-6, rtol=1e-6)
    assert jnp.allclose(sigma, sigma_ref, atol=1e-6, rtol=1e-6)

    # --- f32, multi-block path (>=2 grid steps; 2-TC split on v7x). ---
    t_big = jax.random.uniform(k1, (8, 4, 32, 32), dtype=jnp.float32)  # 32768 elems
    a_b, s_b = rectified_schedule(t_big, alpha_min, sigma_min, force_pallas=True)
    jax.block_until_ready((a_b, s_b))
    a_bref, s_bref = _reference(t_big, alpha_min, sigma_min)
    assert jnp.allclose(a_b, a_bref, atol=1e-6, rtol=1e-6)
    assert jnp.allclose(s_b, s_bref, atol=1e-6, rtol=1e-6)

    # --- bf16, lane-aligned: native-dtype I/O through the Pallas path. ---
    t_bf = jax.random.uniform(k2, (4, 256), dtype=jnp.float32).astype(jnp.bfloat16)
    a_bf, s_bf = rectified_schedule(t_bf, alpha_min, sigma_min, force_pallas=True)
    jax.block_until_ready((a_bf, s_bf))
    a_rbf, s_rbf = _reference(t_bf.astype(jnp.float32), alpha_min, sigma_min)
    assert a_bf.shape == t_bf.shape and a_bf.dtype == jnp.bfloat16
    assert jnp.allclose(a_bf.astype(jnp.float32), a_rbf, atol=1e-2, rtol=1e-2)
    assert jnp.allclose(s_bf.astype(jnp.float32), s_rbf, atol=1e-2, rtol=1e-2)

    # --- ragged size: routed to the fused XLA fallback (no pad/slice copies). ---
    t_rag = jax.random.uniform(k3, (3, 37), dtype=jnp.float32)
    a_r, s_r = rectified_schedule(t_rag, alpha_min, sigma_min, force_pallas=True)
    jax.block_until_ready((a_r, s_r))
    a_rr, s_rr = _reference(t_rag, alpha_min, sigma_min)
    assert a_r.shape == t_rag.shape
    assert jnp.allclose(a_r, a_rr, atol=1e-6, rtol=1e-6)
    assert jnp.allclose(s_r, s_rr, atol=1e-6, rtol=1e-6)

    # --- small-input fallback path (plain XLA) agrees with the Pallas path. ---
    a_fb, s_fb = rectified_schedule(t, alpha_min, sigma_min)  # below threshold
    assert jnp.allclose(a_fb, alpha, atol=1e-6, rtol=1e-6)
    assert jnp.allclose(s_fb, sigma, atol=1e-6, rtol=1e-6)

    print("KERNEL_OK")
</pallas_src>

<mosaic_0001>
module attributes {stable_mosaic.version = 11 : i64} {
  func.func @kernel(%arg0: i32, %arg1: memref<2x1024xf32, #tpu.memory_space<vmem>>, %arg2: memref<2x1024xf32, #tpu.memory_space<vmem>>, %arg3: memref<2x1024xf32, #tpu.memory_space<vmem>>) attributes {dimension_semantics = [#tpu.dimension_semantics<parallel>], iteration_bounds = array<i64: 1>, scalar_prefetch = 0 : i64, scratch_operands = 0 : i64, tpu.core_type = #tpu.core_type<tc>, window_params = [{transform_indices = @transform_0, window_bounds = array<i64: 2, 1024>}, {transform_indices = @transform_1, window_bounds = array<i64: 2, 1024>}, {transform_indices = @transform_2, window_bounds = array<i64: 2, 1024>}]} {
    %c0 = arith.constant 0 : index
    %c0_0 = arith.constant 0 : index
    %0 = vector.load %arg1[%c0, %c0_0] : memref<2x1024xf32, #tpu.memory_space<vmem>>, vector<2x1024xf32>
    %cst = arith.constant 9.990000e-01 : f32
    %1 = vector.broadcast %cst : f32 to vector<2x1024xf32>
    %2 = arith.mulf %0, %1 : vector<2x1024xf32>
    %cst_1 = arith.constant 1.000000e+00 : f32
    %3 = vector.broadcast %cst_1 : f32 to vector<2x1024xf32>
    %4 = arith.subf %3, %2 : vector<2x1024xf32>
    %c0_2 = arith.constant 0 : index
    %c0_3 = arith.constant 0 : index
    %5 = vector.load %arg2[%c0_2, %c0_3] : memref<2x1024xf32, #tpu.memory_space<vmem>>, vector<2x1024xf32>
    tpu.vector_store %arg2[%c0_2, %c0_3], %4 {strides = array<i32>} : memref<2x1024xf32, #tpu.memory_space<vmem>>, vector<2x1024xf32>,
    %cst_4 = arith.constant 9.990000e-01 : f32
    %6 = vector.broadcast %cst_4 : f32 to vector<2x1024xf32>
    %7 = arith.mulf %0, %6 : vector<2x1024xf32>
    %cst_5 = arith.constant 1.000000e-03 : f32
    %8 = vector.broadcast %cst_5 : f32 to vector<2x1024xf32>
    %9 = arith.addf %8, %7 : vector<2x1024xf32>
    %c0_6 = arith.constant 0 : index
    %c0_7 = arith.constant 0 : index
    %10 = vector.load %arg3[%c0_6, %c0_7] : memref<2x1024xf32, #tpu.memory_space<vmem>>, vector<2x1024xf32>
    tpu.vector_store %arg3[%c0_6, %c0_7], %9 {strides = array<i32>} : memref<2x1024xf32, #tpu.memory_space<vmem>>, vector<2x1024xf32>,
    return
  }
  func.func @transform_0(%arg0: i32) -> (i32, i32) {
    %c0_i32 = arith.constant 0 : i32
    %c0_i32_0 = arith.constant 0 : i32
    return %arg0, %c0_i32 : i32, i32
  }
  func.func @transform_1(%arg0: i32) -> (i32, i32) {
    %c0_i32 = arith.constant 0 : i32
    %c0_i32_0 = arith.constant 0 : i32
    return %arg0, %c0_i32 : i32, i32
  }
  func.func @transform_2(%arg0: i32) -> (i32, i32) {
    %c0_i32 = arith.constant 0 : i32
    %c0_i32_0 = arith.constant 0 : i32
    return %arg0, %c0_i32 : i32, i32
  }
}

</mosaic_0001>

<llo_original>
// kernel: tpu_custom_call.1
$region0: #{tpu_custom_call.1}
  #allocation0 [shape = 'u32[]', space=smem, size = 0x4, offset = 0x4, fixed_abs, tag = 'smem constant byte address 0x4 - core index']
  #allocation1 [shape = 'u32[144,128]{1,0:T(1,128)}', space=vmem, size = 0x12000, scoped, tag = 'internal scratch']
  %s0 = inlined_call_operand.hbm [shape: f32[2,1024], index: 0, kind: input, shape index: {}]
  %s1 = inlined_call_operand.hbm [shape: f32[2,1024], index: 1, kind: output, shape index: {0}]
  %s2 = inlined_call_operand.hbm [shape: f32[2,1024], index: 2, kind: output, shape index: {1}]
  %3 = xla_tuple %s1, %s2
  %s4 = sld [smem:[#allocation0]]
  $region26: #{tpu_custom_call.1} parent=0
    _
  %s6 = ssub.s32 1, %s4
  %s7 = scalar_select 0, %s6, %s4
  $region1: #{tpu_custom_call.1} parent=0
    #allocation2 [shape = 'u8[8192]{0}', space=vmem, size = 0x2000, scoped, tag = 'input window, operand 0, single buffered']
    #allocation3 [shape = 's32[1]{0}', space=sflag, size = 0x4, scoped, tag = 'scoped memory for tpu_custom_call.1']
    #allocation4 [shape = 's32[1]{0}', space=sflag, size = 0x4, scoped, tag = 'scoped memory for tpu_custom_call.1']
    #allocation5 [shape = 'u8[8192]{0}', space=vmem, size = 0x2000, scoped, tag = 'output window, operand 0, single buffered']
    #allocation6 [shape = 'u8[8192]{0}', space=vmem, size = 0x2000, scoped, tag = 'output window, operand 1, single buffered']
    #allocation7 [shape = 's32[1]{0}', space=sflag, size = 0x4, scoped, tag = 'scoped memory for tpu_custom_call.1']
    %8 = vsyncpa [#allocation3], 0
    %9 = vsyncpa [#allocation4], 0
    %10 = vsyncpa [#allocation7], 0
    // Predicated region
    $region2: #{tpu_custom_call.1} parent=1 // pred_check
      _
    $region3: #{tpu_custom_call.1} parent=1 // pred_check_branch
      %12 = sbr.rel (0) target = $region5
    $region4: #{tpu_custom_call.1} parent=1 // pred_region
      %s14 = ssub.s32 256, 256
      %15 = vsyncadd [#allocation3], %s14
      %s17 = sshll.u32 [#allocation2], 4
      %s18 = int_to_ptr.vmem [resolvable:$true] %s17
      %20 = dma.hbm_to_vmem [thread:$0]  %s0, 256, %s18, [#allocation3]
    $region5: #{tpu_custom_call.1} parent=1 // pred_fallthru
      _
    // Predicated region
    $region6: #{tpu_custom_call.1} parent=1 // pred_check
      _
    $region7: #{tpu_custom_call.1} parent=1 // pred_check_branch
      %22 = sbr.rel (0) target = $region9
    $region8: #{tpu_custom_call.1} parent=1 // pred_region
      %23 = dma.done [#allocation3], 256
    $region9: #{tpu_custom_call.1} parent=1 // pred_fallthru
      _
    %v24 = vld [vmem:[#allocation2] sm:$0xff]
    %v25 = vld [vmem:[#allocation2 + $0x8] sm:$0xff]
    %v26 = vmul.f32 %v24, 0.999
    %v27 = vmul.f32 %v25, 0.999
    %v28 = vsub.f32 1.0, %v26
    %v29 = vsub.f32 1.0, %v27
    %30 = vst [vmem:[#allocation5] sm:$0xff] %v28
    %31 = vst [vmem:[#allocation5 + $0x8] sm:$0xff] %v29
    %v32 = vadd.f32 %v26, 0.001
    %v33 = vadd.f32 %v27, 0.001
    %34 = vst [vmem:[#allocation6] sm:$0xff] %v32
    %35 = vst [vmem:[#allocation6 + $0x8] sm:$0xff] %v33
    // Predicated region
    $region10: #{tpu_custom_call.1} parent=1 // pred_check
      _
    $region11: #{tpu_custom_call.1} parent=1 // pred_check_branch
      %37 = sbr.rel (0) target = $region13
    $region12: #{tpu_custom_call.1} parent=1 // pred_region
      %s39 = ssub.s32 256, 256
      %40 = vsyncadd [#allocation4], %s39
      %s42 = sshll.u32 [#allocation5], 4
      %s43 = int_to_ptr.vmem [resolvable:$true] %s42
      %45 = dma.vmem_to_hbm [thread:$0]  %s43, 256, %s1, [#allocation4]
    $region13: #{tpu_custom_call.1} parent=1 // pred_fallthru
      _
    // Predicated region
    $region14: #{tpu_custom_call.1} parent=1 // pred_check
      _
    $region15: #{tpu_custom_call.1} parent=1 // pred_check_branch
      %47 = sbr.rel (0) target = $region17
    $region16: #{tpu_custom_call.1} parent=1 // pred_region
      %s49 = ssub.s32 256, 256
      %50 = vsyncadd [#allocation7], %s49
      %s52 = sshll.u32 [#allocation6], 4
      %s53 = int_to_ptr.vmem [resolvable:$true] %s52
      %55 = dma.vmem_to_hbm [thread:$0]  %s53, 256, %s2, [#allocation7]
    $region17: #{tpu_custom_call.1} parent=1 // pred_fallthru
      _
    // Predicated region
    $region18: #{tpu_custom_call.1} parent=1 // pred_check
      _
    $region19: #{tpu_custom_call.1} parent=1 // pred_check_branch
      %57 = sbr.rel (0) target = $region21
    $region20: #{tpu_custom_call.1} parent=1 // pred_region
      %58 = dma.done [#allocation4], 256
    $region21: #{tpu_custom_call.1} parent=1 // pred_fallthru
      _
    // Predicated region
    $region22: #{tpu_custom_call.1} parent=1 // pred_check
      _
    $region23: #{tpu_custom_call.1} parent=1 // pred_check_branch
      %60 = sbr.rel (0) target = $region25
    $region24: #{tpu_custom_call.1} parent=1 // pred_region
      %61 = dma.done [#allocation7], 256
    $region25: #{tpu_custom_call.1} parent=1 // pred_fallthru
      _
    %62 = vsyncpa [#allocation3], 1
    %63 = vsyncpa [#allocation4], 1
    %64 = vsyncpa [#allocation7], 1

</llo_original>
